<compile_context>
chip_gen: v6e
topology: v6e:2x2x1
jax: 0.10.0
libtpu: 0.0.40
codegen_flags: <defaults>
</compile_context>

<pallas_src>
import functools

import jax
import jax.numpy as jnp
from jax import lax
from jax.experimental import pallas as pl
from jax.experimental.pallas import tpu as pltpu

# ---- static module hyper-parameters (match Encoder.__init__ defaults) ----
NORMALIZED = True
POOLING = "cls"          # sentence_pooling_method default
TEMPERATURE = 0.02
MARGIN = 0.5


def _vmem_limit_bytes():
    # Per-generation scoped-VMEM limit (v5e/v6e: 128 MiB physical, v7x: 64 MiB).
    try:
        cap = int(getattr(pltpu.get_tpu_info(), "vmem_capacity_bytes",
                          64 * 1024 * 1024))
    except Exception:
        cap = 64 * 1024 * 1024
    return max(32 * 1024 * 1024, min(cap * 3 // 4, 96 * 1024 * 1024))


_VMEM_LIMIT = _vmem_limit_bytes()


def _row_tile(n):
    # Full rows when small, else 512 (multiple of 8 & 128: keeps the v5e 128^2
    # MXU fed and reaches ~85% of the HBM roofline on v6e vs ~63% at 256).
    return n if n <= 512 else 512


def _aligned_divisor(n, cap, align):
    # Largest divisor of n that is <= cap and a multiple of `align`; falls back
    # to n (full extent) so reduction tiles never read out-of-bounds garbage.
    if n <= cap:
        return n
    for c in range(cap, 0, -1):
        if n % c == 0 and c % align == 0:
            return c
    return n


def _spec(shape, index_map, resident=False):
    # resident=True: constant index_map -> single buffer (double-buffering a
    # block that never changes only wastes VMEM).
    if resident:
        try:
            return pl.BlockSpec(shape, index_map, pipeline_mode=pl.Buffered(1))
        except Exception:      # older jax without pipeline_mode / Buffered(1)
            pass
    return pl.BlockSpec(shape, index_map)


# ============================================================================
# Kernel 1 ('cls' path): K-tiled  tanh(x @ W + b)  +  L2 normalize.
#   x is the CLS-token embedding only -> no wasted S-1 tokens of DMA/compute.
# ============================================================================
def _cls_encode_kernel(x_ref, w_ref, b_ref, o_ref, acc_ref, *, normalized):
    k = pl.program_id(1)

    @pl.when(k == 0)
    def _():
        acc_ref[...] = jnp.zeros_like(acc_ref)

    acc_ref[...] += jnp.dot(x_ref[...], w_ref[...],
                            preferred_element_type=jnp.float32)

    @pl.when(k == pl.num_programs(1) - 1)
    def _():
        reps = jnp.tanh(acc_ref[...] + b_ref[...])
        if normalized:
            # F.normalize: v / max(||v||, 1e-12)   (exact sqrt + divide)
            nrm = jnp.sqrt(jnp.sum(reps * reps, axis=-1, keepdims=True))
            reps = reps / jnp.maximum(nrm, 1e-12)
        o_ref[...] = reps


def cls_encode(x_bf16, w_bf16, b_f32):
    n, hin = x_bf16.shape
    ho = w_bf16.shape[1]
    tm = _row_tile(n)
    tk = _aligned_divisor(hin, 512, 128)     # K tile must divide H exactly
    k_tiles = hin // tk
    cost = pl.CostEstimate(
        flops=2 * n * hin * ho,
        transcendentals=n * ho,
        bytes_accessed=n * hin * 2 + hin * ho * 2 + ho * 4 + n * ho * 4,
    )
    kern = functools.partial(_cls_encode_kernel, normalized=NORMALIZED)
    return pl.pallas_call(
        kern,
        out_shape=jax.ShapeDtypeStruct((n, ho), jnp.float32),
        grid=(pl.cdiv(n, tm), k_tiles),
        in_specs=[
            pl.BlockSpec((tm, tk), lambda i, k: (i, k)),
            _spec((tk, ho), lambda i, k: (k, 0), resident=(k_tiles == 1)),
            _spec((1, ho), lambda i, k: (0, 0), resident=True),
        ],
        out_specs=pl.BlockSpec((tm, ho), lambda i, k: (i, 0)),
        scratch_shapes=[pltpu.VMEM((tm, ho), jnp.float32)],
        compiler_params=pltpu.CompilerParams(
            dimension_semantics=("parallel", "arbitrary"),
            vmem_limit_bytes=_VMEM_LIMIT,
        ),
        cost_estimate=cost,
    )(x_bf16, w_bf16, b_f32.reshape(1, ho))


# ============================================================================
# Kernel 2 ('mean' path, fully fused):
#   per seq-chunk:  h = tanh(emb @ W + b);  acc += sum_s(h * mask);  den += mask
#   last chunk:     reps = acc / den  ->  L2 normalize  ->  store (B_tile, H)
# The (B,S,H) hidden tensor never touches HBM.
# ============================================================================
def _mean_encode_kernel(emb_ref, mask_ref, w_ref, b_ref, o_ref,
                        acc_ref, den_ref, *, normalized):
    si = pl.program_id(1)

    @pl.when(si == 0)
    def _():
        acc_ref[...] = jnp.zeros_like(acc_ref)
        den_ref[...] = jnp.zeros_like(den_ref)

    x = emb_ref[...]                                  # (TB, TS, Hin) bf16
    tb, ts, hin = x.shape
    mask = mask_ref[...].astype(jnp.float32)          # (TB, TS)
    h = jnp.dot(x.reshape(tb * ts, hin), w_ref[...],
                preferred_element_type=jnp.float32)
    ho = h.shape[-1]
    h = jnp.tanh(h + b_ref[...]).reshape(tb, ts, ho)
    acc_ref[...] += jnp.sum(h * mask[:, :, None], axis=1)
    den_ref[...] += jnp.sum(mask, axis=1, keepdims=True)

    @pl.when(si == pl.num_programs(1) - 1)
    def _():
        reps = acc_ref[...] / den_ref[...]            # exact masked mean
        if normalized:
            nrm = jnp.sqrt(jnp.sum(reps * reps, axis=-1, keepdims=True))
            reps = reps / jnp.maximum(nrm, 1e-12)
        o_ref[...] = reps


def mean_encode(emb_bf16, mask_f32, w_bf16, b_f32):
    b, s, hin = emb_bf16.shape
    ho = w_bf16.shape[1]
    tb = _aligned_divisor(b, 256, 8)
    ts = _aligned_divisor(s, 512, 128)
    cost = pl.CostEstimate(
        flops=2 * b * s * hin * ho,
        transcendentals=b * s * ho,
        bytes_accessed=(b * s * hin * 2 + b * s * 4 + hin * ho * 2
                        + ho * 4 + b * ho * 4),
    )
    kern = functools.partial(_mean_encode_kernel, normalized=NORMALIZED)
    return pl.pallas_call(
        kern,
        out_shape=jax.ShapeDtypeStruct((b, ho), jnp.float32),
        grid=(b // tb, s // ts),
        in_specs=[
            pl.BlockSpec((tb, ts, hin), lambda bi, si: (bi, si, 0)),
            pl.BlockSpec((tb, ts), lambda bi, si: (bi, si)),
            _spec((hin, ho), lambda bi, si: (0, 0), resident=True),
            _spec((1, ho), lambda bi, si: (0, 0), resident=True),
        ],
        out_specs=pl.BlockSpec((tb, ho), lambda bi, si: (bi, 0)),
        scratch_shapes=[
            pltpu.VMEM((tb, ho), jnp.float32),
            pltpu.VMEM((tb, 1), jnp.float32),
        ],
        compiler_params=pltpu.CompilerParams(
            dimension_semantics=("parallel", "arbitrary"),
            vmem_limit_bytes=_VMEM_LIMIT,
        ),
        cost_estimate=cost,
    )(emb_bf16, mask_f32, w_bf16, b_f32.reshape(1, ho))


# ============================================================================
# Kernel 3: fused similarity scores + margin loss, tiled over query rows.
#   scores = (q @ docs^T) / temperature   (docs pre-transposed in the wrapper,
#   bf16 MXU inputs, f32 accumulate, lane-dense padded N output)
#   torch masking: masked = mask*scores with mask[:,0]=0  (col 0 -> 0.0)
#   loss_row = relu(pos - mean(topk(masked, k)) + margin); mean done in JAX.
# ============================================================================
def _scores_loss_kernel(q_ref, dt_ref, s_ref, loss_ref, *,
                        inv_temperature, n_real, k, margin):
    scores = jnp.dot(q_ref[...], dt_ref[...],
                     preferred_element_type=jnp.float32) * inv_temperature
    s_ref[...] = scores

    b, npad = scores.shape
    col = lax.broadcasted_iota(jnp.int32, (b, npad), 1)
    pos = scores[:, 0:1]                                   # positive column
    # torch: mask = ones; mask[:,0] = 0; masked = mask*scores  (0.0, not -inf,
    # so 0 can legitimately win the top-k when all real negatives are < 0).
    m = jnp.where(col == 0, 0.0, scores)
    m = jnp.where(col >= n_real, -jnp.inf, m)              # exclude lane padding
    acc = jnp.zeros((b, 1), jnp.float32)
    for _ in range(k):                                     # iterative top-k
        cur = jnp.max(m, axis=1, keepdims=True)
        acc = acc + cur
        # knock out only the FIRST occurrence of the current max (matches topk)
        first = jnp.min(jnp.where(m == cur, col, npad), axis=1, keepdims=True)
        m = jnp.where(col == first, -jnp.inf, m)
    max_neg = acc * (1.0 / k)
    loss_ref[...] = jnp.maximum(pos - max_neg + margin, 0.0)   # per-row losses


def scores_and_loss(q_reps, docs_reps):
    b, h = q_reps.shape
    n = docs_reps.shape[0]
    n_pad = ((n + 127) // 128) * 128              # lane-dense scores output
    # bf16 MXU inputs (reps are L2-normalized, |v| <= 1); docs transposed in
    # the wrapper so the kernel contracts (1,)/(0,) with no in-kernel transpose.
    q_bf16 = q_reps.astype(jnp.bfloat16)
    docs_t = jnp.pad(docs_reps.astype(jnp.bfloat16).T, ((0, 0), (0, n_pad - n)))
    tbq = b if b <= 256 else 256
    k = min(3, n)
    cost = pl.CostEstimate(
        flops=2 * b * n_pad * h,
        transcendentals=0,
        bytes_accessed=b * h * 2 + h * n_pad * 2 + b * n_pad * 4 + b * 4,
    )
    kern = functools.partial(
        _scores_loss_kernel, inv_temperature=1.0 / TEMPERATURE,
        n_real=n, k=k, margin=MARGIN)
    scores_pad, row_losses = pl.pallas_call(
        kern,
        out_shape=(
            jax.ShapeDtypeStruct((b, n_pad), jnp.float32),
            jax.ShapeDtypeStruct((b, 1), jnp.float32),
        ),
        grid=(pl.cdiv(b, tbq),),
        in_specs=[
            pl.BlockSpec((tbq, h), lambda i: (i, 0)),
            _spec((h, n_pad), lambda i: (0, 0), resident=True),
        ],
        out_specs=(
            pl.BlockSpec((tbq, n_pad), lambda i: (i, 0)),
            pl.BlockSpec((tbq, 1), lambda i: (i, 0)),
        ),
        compiler_params=pltpu.CompilerParams(
            dimension_semantics=("parallel",),
            vmem_limit_bytes=_VMEM_LIMIT,
        ),
        cost_estimate=cost,
    )(q_bf16, docs_t)
    # mean over query rows finished in JAX (keeps the kernel row-tiled/parallel)
    return scores_pad[:, :n], jnp.mean(row_losses)


# ============================================================================
# Plain-JAX glue: synthetic backbone params + Encoder.forward
# ============================================================================
def make_params(key, vocab, hidden):
    k1, k2, k3 = jax.random.split(key, 3)
    w0 = 0.2 * jax.random.normal(k2, (hidden, hidden), jnp.float32)
    return {
        "embedding": 0.1 * jax.random.normal(k1, (vocab, hidden), jnp.float32),
        "w0_bf16": w0.astype(jnp.bfloat16),     # bf16 weight for the MXU
        "b0": 0.05 * jax.random.normal(k3, (hidden,), jnp.float32),
    }


def encode_cls(params, input_ids):
    # cls pooling: only the CLS token ever reaches the sentence rep, and the
    # synthetic projection is per-token, so project token 0 only (exact).
    cls_ids = input_ids[:, 0]                                    # (B,)
    emb = jnp.take(params["embedding"], cls_ids, axis=0)         # (B, H)
    return cls_encode(emb.astype(jnp.bfloat16), params["w0_bf16"], params["b0"])


def encode_mean(params, input_ids, attention_mask):
    emb = jnp.take(params["embedding"], input_ids, axis=0)       # (B, S, H)
    return mean_encode(emb.astype(jnp.bfloat16),
                       attention_mask.astype(jnp.float32),
                       params["w0_bf16"], params["b0"])


def encode(params, input_ids, attention_mask):
    if POOLING == "cls":
        return encode_cls(params, input_ids)
    return encode_mean(params, input_ids, attention_mask)


def encoder_forward(params, query, doc):
    q_reps = encode(params, query["input_ids"], query["attention_mask"])
    docs_reps = encode(params, doc["input_ids"], doc["attention_mask"])
    group_size = docs_reps.shape[0] // q_reps.shape[0]
    scores, loss = scores_and_loss(q_reps, docs_reps)            # fused kernel
    scores = scores.reshape(q_reps.shape[0], -1)
    target = jnp.arange(scores.shape[0], dtype=jnp.int32) * group_size
    return {
        "loss": loss,
        "scores": scores,
        "q_reps": q_reps,
        "docs_reps": docs_reps,
        "labels": target,
    }


# ---- pure-JAX reference (same bf16 weight/input casts) for tolerance checks --
def _encode_ref(params, input_ids, attention_mask, pooling):
    b, s = input_ids.shape
    hin = params["embedding"].shape[1]
    emb = jnp.take(params["embedding"], input_ids, axis=0).astype(jnp.bfloat16)
    h = jnp.dot(emb.reshape(b * s, hin), params["w0_bf16"],
                preferred_element_type=jnp.float32)
    h = jnp.tanh(h + params["b0"]).reshape(b, s, -1)
    if pooling == "cls":
        reps = h[:, 0]
    else:
        m = attention_mask.astype(jnp.float32)
        reps = jnp.sum(h * m[:, :, None], axis=1) / jnp.sum(m, axis=1,
                                                            keepdims=True)
    if NORMALIZED:
        nrm = jnp.sqrt(jnp.sum(reps * reps, axis=-1, keepdims=True))
        reps = reps / jnp.maximum(nrm, 1e-12)
    return reps


if __name__ == "__main__":
    # small but lane-dense hidden size (multiple of 128)
    B, GROUP, S, H, VOCAB = 2, 2, 8, 128, 64
    NDOCS = B * GROUP

    key = jax.random.PRNGKey(0)
    kp, kq, kd = jax.random.split(key, 3)
    params = make_params(kp, VOCAB, H)

    query = {
        "input_ids": jax.random.randint(kq, (B, S), 0, VOCAB, dtype=jnp.int32),
        "attention_mask": jnp.ones((B, S), jnp.float32),
    }
    doc = {
        "input_ids": jax.random.randint(kd, (NDOCS, S), 0, VOCAB, dtype=jnp.int32),
        "attention_mask": jnp.ones((NDOCS, S), jnp.float32),
    }

    out = encoder_forward(params, query, doc)
    jax.block_until_ready(out["loss"])
    jax.block_until_ready(out["scores"])

    assert out["q_reps"].shape == (B, H)
    assert out["docs_reps"].shape == (NDOCS, H)
    assert out["scores"].shape == (B, NDOCS)
    assert out["labels"].shape == (B,)
    assert bool(jnp.isfinite(out["loss"]))
    assert bool(jnp.all(jnp.isfinite(out["scores"])))

    # cls-path numeric check vs. pure-JAX reference (same bf16 casts)
    ref_q = _encode_ref(params, query["input_ids"], query["attention_mask"], "cls")
    assert bool(jnp.allclose(out["q_reps"], ref_q, atol=5e-2, rtol=5e-2))

    # mean-path (fused kernel) smoke test + numeric check
    mean_reps = encode_mean(params, doc["input_ids"], doc["attention_mask"])
    jax.block_until_ready(mean_reps)
    ref_mean = _encode_ref(params, doc["input_ids"], doc["attention_mask"], "mean")
    assert mean_reps.shape == (NDOCS, H)
    assert bool(jnp.allclose(mean_reps, ref_mean, atol=5e-2, rtol=5e-2))

    print("KERNEL_OK")
</pallas_src>

<mosaic_0001>
module attributes {stable_mosaic.version = 11 : i64} {
  func.func @_cls_encode_kernel(%arg0: i32, %arg1: i32, %arg2: memref<2x128xbf16, #tpu.memory_space<vmem>>, %arg3: memref<128x128xbf16, #tpu.memory_space<vmem>>, %arg4: memref<1x128xf32, #tpu.memory_space<vmem>>, %arg5: memref<2x128xf32, #tpu.memory_space<vmem>>, %arg6: memref<2x128xf32, #tpu.memory_space<vmem>>) attributes {dimension_semantics = [#tpu.dimension_semantics<parallel>, #tpu.dimension_semantics<arbitrary>], iteration_bounds = array<i64: 1, 1>, scalar_prefetch = 0 : i64, scratch_operands = 1 : i64, tpu.core_type = #tpu.core_type<tc>, window_params = [{transform_indices = @transform_0, window_bounds = array<i64: 2, 128>}, {pipeline_mode = #tpu.pipeline_mode<synchronous>, transform_indices = @transform_1, window_bounds = array<i64: 128, 128>}, {pipeline_mode = #tpu.pipeline_mode<synchronous>, transform_indices = @transform_2, window_bounds = array<i64: 1, 128>}, {transform_indices = @transform_3, window_bounds = array<i64: 2, 128>}]} {
    %c0_i32 = arith.constant 0 : i32
    %0 = arith.cmpi eq, %arg1, %c0_i32 : i32
    %1 = arith.extui %0 : i1 to i32
    %c0_i32_0 = arith.constant 0 : i32
    %2 = arith.cmpi ne, %1, %c0_i32_0 : i32
    scf.if %2 {
      %cst_10 = arith.constant 0.000000e+00 : f32
      %12 = vector.broadcast %cst_10 : f32 to vector<2x128xf32>
      %c0_11 = arith.constant 0 : index
      %c0_12 = arith.constant 0 : index
      %13 = vector.load %arg6[%c0_11, %c0_12] : memref<2x128xf32, #tpu.memory_space<vmem>>, vector<2x128xf32>
      tpu.vector_store %arg6[%c0_11, %c0_12], %12 {strides = array<i32>} : memref<2x128xf32, #tpu.memory_space<vmem>>, vector<2x128xf32>,
    } else {
    }
    %c0 = arith.constant 0 : index
    %c0_1 = arith.constant 0 : index
    %3 = vector.load %arg6[%c0, %c0_1] : memref<2x128xf32, #tpu.memory_space<vmem>>, vector<2x128xf32>
    %c0_2 = arith.constant 0 : index
    %c0_3 = arith.constant 0 : index
    %4 = vector.load %arg2[%c0_2, %c0_3] : memref<2x128xbf16, #tpu.memory_space<vmem>>, vector<2x128xbf16>
    %c0_4 = arith.constant 0 : index
    %c0_5 = arith.constant 0 : index
    %5 = vector.load %arg3[%c0_4, %c0_5] : memref<128x128xbf16, #tpu.memory_space<vmem>>, vector<128x128xbf16>
    %cst = arith.constant dense<0.000000e+00> : vector<2x128xf32>
    %6 = tpu.matmul %4, %5, %cst {dimension_numbers = #tpu.dot_dimension_numbers<[1], [0], [0], [1], [0, 0, 1, 1], [], []>} : vector<2x128xbf16>, vector<128x128xbf16>, vector<2x128xf32> -> vector<2x128xf32>
    %7 = arith.addf %3, %6 : vector<2x128xf32>
    %c0_6 = arith.constant 0 : index
    %c0_7 = arith.constant 0 : index
    %8 = vector.load %arg6[%c0_6, %c0_7] : memref<2x128xf32, #tpu.memory_space<vmem>>, vector<2x128xf32>
    tpu.vector_store %arg6[%c0_6, %c0_7], %7 {strides = array<i32>} : memref<2x128xf32, #tpu.memory_space<vmem>>, vector<2x128xf32>,
    %c0_i32_8 = arith.constant 0 : i32
    %9 = arith.cmpi eq, %arg1, %c0_i32_8 : i32
    %10 = arith.extui %9 : i1 to i32
    %c0_i32_9 = arith.constant 0 : i32
    %11 = arith.cmpi ne, %10, %c0_i32_9 : i32
    scf.if %11 {
      %c0_10 = arith.constant 0 : index
      %c0_11 = arith.constant 0 : index
      %12 = vector.load %arg6[%c0_10, %c0_11] : memref<2x128xf32, #tpu.memory_space<vmem>>, vector<2x128xf32>
      %c0_12 = arith.constant 0 : index
      %c0_13 = arith.constant 0 : index
      %13 = vector.load %arg4[%c0_12, %c0_13] : memref<1x128xf32, #tpu.memory_space<vmem>>, vector<1x128xf32>
      %14 = vector.broadcast %13 : vector<1x128xf32> to vector<2x128xf32>
      %15 = arith.addf %12, %14 : vector<2x128xf32>
      %16 = math.tanh %15 : vector<2x128xf32>
      %17 = arith.mulf %16, %16 : vector<2x128xf32>
      %cst_14 = arith.constant dense<0.000000e+00> : vector<2xf32>
      %18 = vector.multi_reduction <add>, %17, %cst_14 [1] : vector<2x128xf32> to vector<2xf32>
      %19 = vector.shape_cast %18 : vector<2xf32> to vector<2x1xf32>
      %20 = math.sqrt %19 : vector<2x1xf32>
      %cst_15 = arith.constant 9.99999996E-13 : f32
      %21 = vector.broadcast %cst_15 : f32 to vector<2x1xf32>
      %22 = arith.maximumf %20, %21 : vector<2x1xf32>
      %23 = vector.broadcast %22 : vector<2x1xf32> to vector<2x128xf32>
      %24 = arith.divf %16, %23 : vector<2x128xf32>
      %c0_16 = arith.constant 0 : index
      %c0_17 = arith.constant 0 : index
      %25 = vector.load %arg5[%c0_16, %c0_17] : memref<2x128xf32, #tpu.memory_space<vmem>>, vector<2x128xf32>
      tpu.vector_store %arg5[%c0_16, %c0_17], %24 {strides = array<i32>} : memref<2x128xf32, #tpu.memory_space<vmem>>, vector<2x128xf32>,
    } else {
    }
    return
  }
  func.func @transform_0(%arg0: i32, %arg1: i32) -> (i32, i32) {
    %c0_i32 = arith.constant 0 : i32
    return %arg0, %arg1 : i32, i32
  }
  func.func @transform_1(%arg0: i32, %arg1: i32) -> (i32, i32) {
    %c0_i32 = arith.constant 0 : i32
    %c0_i32_0 = arith.constant 0 : i32
    return %arg1, %c0_i32 : i32, i32
  }
  func.func @transform_2(%arg0: i32, %arg1: i32) -> (i32, i32) {
    %c0_i32 = arith.constant 0 : i32
    %c0_i32_0 = arith.constant 0 : i32
    %c0_i32_1 = arith.constant 0 : i32
    return %c0_i32, %c0_i32_0 : i32, i32
  }
  func.func @transform_3(%arg0: i32, %arg1: i32) -> (i32, i32) {
    %c0_i32 = arith.constant 0 : i32
    %c0_i32_0 = arith.constant 0 : i32
    return %arg0, %c0_i32 : i32, i32
  }
}

</mosaic_0001>

<llo_original>
// kernel: tpu_custom_call.1
$region0: #{tpu_custom_call.1}
  #allocation0 [shape = 'u32[]', space=smem, size = 0x4, offset = 0x4, fixed_abs, tag = 'smem constant byte address 0x4 - core index']
  #allocation1 [shape = 'u32[144,128]{1,0:T(1,128)}', space=vmem, size = 0x12000, scoped, tag = 'internal scratch']
  #allocation2 [shape = 'f32[2,128]{1,0:T(2,128)}', space=vmem, size = 0x400, scoped, tag = 'scratch operand']
  %s0 = inlined_call_operand.hbm [shape: bf16[2,128], index: 0, kind: input, shape index: {}]
  %s1 = inlined_call_operand.hbm [shape: bf16[128,128], index: 1, kind: input, shape index: {}]
  %s2 = inlined_call_operand.vmem [shape: f32[1,128], index: 2, kind: input, shape index: {}]
  %s3 = inlined_call_operand.hbm [shape: f32[2,128], index: 3, kind: output, shape index: {}]
  %s4 = sld [smem:[#allocation0]]
  $region38: #{tpu_custom_call.1} parent=0
    _
  %s6 = ssub.s32 1, %s4
  %s7 = scalar_select 0, %s6, %s4
  $region1: #{tpu_custom_call.1} parent=0
    #allocation3 [shape = 'u8[512]{0}', space=vmem, size = 0x400, scoped, tag = 'input window, operand 0, single buffered']
    #allocation4 [shape = 's32[1]{0}', space=sflag, size = 0x4, scoped, tag = 'scoped memory for tpu_custom_call.1']
    #allocation5 [shape = 's32[1]{0}', space=sflag, size = 0x4, scoped, tag = 'scoped memory for tpu_custom_call.1']
    #allocation6 [shape = 'u8[32768]{0}', space=vmem, size = 0x8000, scoped, tag = 'input window, operand 1, single buffered']
    #allocation7 [shape = 's32[1]{0}', space=sflag, size = 0x4, scoped, tag = 'scoped memory for tpu_custom_call.1']
    #allocation8 [shape = 'u8[1024]{0}', space=vmem, size = 0x400, scoped, tag = 'output window, operand 0, single buffered']
    %8 = vsyncpa [#allocation4], 0
    %9 = vsyncpa [#allocation7], 0
    %10 = vsyncpa [#allocation5], 0
    // Predicated region
    $region2: #{tpu_custom_call.1} parent=1 // pred_check
      _
    $region3: #{tpu_custom_call.1} parent=1 // pred_check_branch
      %12 = sbr.rel (0) target = $region5
    $region4: #{tpu_custom_call.1} parent=1 // pred_region
      %s14 = ssub.s32 16, 16
      %15 = vsyncadd [#allocation4], %s14
      %s17 = sshll.u32 [#allocation3], 4
      %s18 = int_to_ptr.vmem [resolvable:$true] %s17
      %20 = dma.hbm_to_vmem [thread:$0]  %s0, 16, %s18, [#allocation4]
    $region5: #{tpu_custom_call.1} parent=1 // pred_fallthru
      _
    // Predicated region
    $region6: #{tpu_custom_call.1} parent=1 // pred_check
      _
    $region7: #{tpu_custom_call.1} parent=1 // pred_check_branch
      %22 = sbr.rel (0) target = $region9
    $region8: #{tpu_custom_call.1} parent=1 // pred_region
      %s24 = ssub.s32 1024, 1024
      %25 = vsyncadd [#allocation7], %s24
      %s26 = sshll.u32 [#allocation6], 4
      %s27 = int_to_ptr.vmem [resolvable:$true] %s26
      %32 = dma.hbm_to_vmem [thread:$0]  %s1, 1024, %s27, [#allocation7], 64, 64, 4
    $region9: #{tpu_custom_call.1} parent=1 // pred_fallthru
      _
    // Predicated region
    $region10: #{tpu_custom_call.1} parent=1 // pred_check
      _
    $region11: #{tpu_custom_call.1} parent=1 // pred_check_branch
      %34 = sbr.rel (0) target = $region13
    $region12: #{tpu_custom_call.1} parent=1 // pred_region
      _
    $region13: #{tpu_custom_call.1} parent=1 // pred_fallthru
      _
    // Predicated region
    $region14: #{tpu_custom_call.1} parent=1 // pred_check
      _
    $region15: #{tpu_custom_call.1} parent=1 // pred_check_branch
      %36 = sbr.rel (0) target = $region17
    $region16: #{tpu_custom_call.1} parent=1 // pred_region
      %37 = dma.done [#allocation4], 16
    $region17: #{tpu_custom_call.1} parent=1 // pred_fallthru
      _
    // Predicated region
    $region18: #{tpu_custom_call.1} parent=1 // pred_check
      _
    $region19: #{tpu_custom_call.1} parent=1 // pred_check_branch
      %39 = sbr.rel (0) target = $region21
    $region20: #{tpu_custom_call.1} parent=1 // pred_region
      %40 = dma.done [#allocation7], 1024
    $region21: #{tpu_custom_call.1} parent=1 // pred_fallthru
      _
    %p42 = scmp.eq.s32.totalorder 0, 0
    // Predicated region
    $region22: #{tpu_custom_call.1} parent=1 // pred_check
      %p43 = pneg %p42
    $region23: #{tpu_custom_call.1} parent=1 // pred_check_branch
      %45 = sbr.rel (%p43) target = $region25
    $region24: #{tpu_custom_call.1} parent=1 // pred_region
      %46 = vst [vmem:[#allocation2] sm:$0x3] 0.0
    $region25: #{tpu_custom_call.1} parent=1 // pred_fallthru
      _
    %v47 = vld [vmem:[#allocation2] sm:$0x3]
    %v48 = vld [vmem:[#allocation3] sm:$0x1]
    %v49 = vld [vmem:[#allocation6] sm:$0xf]
    %v50 = vld [vmem:[#allocation6 + $0x4] sm:$0xf]
    %v51 = vld [vmem:[#allocation6 + $0x8] sm:$0xf]
    %v52 = vld [vmem:[#allocation6 + $0xc] sm:$0xf]
    %v53 = vld [vmem:[#allocation6 + $0x10] sm:$0xf]
    %v54 = vld [vmem:[#allocation6 + $0x14] sm:$0xf]
    %v55 = vld [vmem:[#allocation6 + $0x18] sm:$0xf]
    %v56 = vld [vmem:[#allocation6 + $0x1c] sm:$0xf]
    %v57 = vld [vmem:[#allocation6 + $0x20] sm:$0xf]
    %v58 = vld [vmem:[#allocation6 + $0x24] sm:$0xf]
    %v59 = vld [vmem:[#allocation6 + $0x28] sm:$0xf]
    %v60 = vld [vmem:[#allocation6 + $0x2c] sm:$0xf]
    %v61 = vld [vmem:[#allocation6 + $0x30] sm:$0xf]
    %v62 = vld [vmem:[#allocation6 + $0x34] sm:$0xf]
    %v63 = vld [vmem:[#allocation6 + $0x38] sm:$0xf]
    %v64 = vld [vmem:[#allocation6 + $0x3c] sm:$0xf]
    %v81 = vunpack.c.l.b16 %v49
    %v82 = vunpack.c.l.b16 %v50
    %v83 = vunpack.c.l.b16 %v51
    %v84 = vunpack.c.l.b16 %v52
    %v85 = vunpack.c.l.b16 %v53
    %v86 = vunpack.c.l.b16 %v54
    %v87 = vunpack.c.l.b16 %v55
    %v88 = vunpack.c.l.b16 %v56
    %v89 = vunpack.c.l.b16 %v57
    %v90 = vunpack.c.l.b16 %v58
    %v91 = vunpack.c.l.b16 %v59
    %v92 = vunpack.c.l.b16 %v60
    %v93 = vunpack.c.l.b16 %v61
    %v94 = vunpack.c.l.b16 %v62
    %v95 = vunpack.c.l.b16 %v63
    %v96 = vunpack.c.l.b16 %v64
    %v97 = vpack.c.b16 %v82, %v81
    %v98 = vpack.c.b16 %v84, %v83
    %v99 = vpack.c.b16 %v86, %v85
    %v100 = vpack.c.b16 %v88, %v87
    %v101 = vpack.c.b16 %v90, %v89
    %v102 = vpack.c.b16 %v92, %v91
    %v103 = vpack.c.b16 %v94, %v93
    %v104 = vpack.c.b16 %v96, %v95
    %113 = vmatprep.subr.bf16.mxu0 0
    %114 = vmatpush1.bf16.msra.mxu0 %v104
    %115 = vmatprep.subr.bf16.mxu0 0
    %116 = vmatpush1.bf16.msra.mxu0 %v103
    %117 = vmatprep.subr.bf16.mxu0 0
    %118 = vmatpush1.bf16.msra.mxu0 %v102
    %119 = vmatprep.subr.bf16.mxu0 0
    %120 = vmatpush1.bf16.msra.mxu0 %v101
    %121 = vmatprep.subr.bf16.mxu0 0
    %122 = vmatpush1.bf16.msra.mxu0 %v100
    %123 = vmatprep.subr.bf16.mxu0 0
    %124 = vmatpush1.bf16.msra.mxu0 %v99
    %125 = vmatprep.subr.bf16.mxu0 0
    %126 = vmatpush1.bf16.msra.mxu0 %v98
    %127 = vmatprep.subr.bf16.mxu0 0
    %128 = vmatpush1.bf16.msra.mxu0 %v97
    %129 = vmatprep.subr.bf16.mxu0 0
    %130 = vmatpush2.bf16.msra.mxu0 0
    %131 = vmatprep.subr.bf16.mxu0 0
    %132 = vmatpush2.bf16.msra.mxu0 0
    %133 = vmatprep.subr.bf16.mxu0 0
    %134 = vmatpush2.bf16.msra.mxu0 0
    %135 = vmatprep.subr.bf16.mxu0 0
    %136 = vmatpush2.bf16.msra.mxu0 0
    %137 = vmatprep.subr.bf16.mxu0 0
    %138 = vmatpush2.bf16.msra.mxu0 0
    %139 = vmatprep.subr.bf16.mxu0 0
    %140 = vmatpush2.bf16.msra.mxu0 0
    %141 = vmatprep.subr.bf16.mxu0 0
    %142 = vmatpush2.bf16.msra.mxu0 0
    %143 = vmatprep.subr.bf16.mxu0 0
    %144 = vmatpush2.bf16.msra.mxu0 0
    %145 = vmatprep.mubr.bf16.mxu0 0
    %146 = vmatmul.mubr.bf16.gmra.mxu0 %v48
    %v147 = vpop.f32.mrf.mxu0
    %v148 = vadd.f32 0.0, %v147
    %v149 = vpop.f32.mrf.mxu0
    %v150 = vpop.f32.mrf.mxu0
    %v151 = vpop.f32.mrf.mxu0
    %152 = vdwg.mxu0
    %v153 = vadd.f32 %v47, %v148
    %154 = vst [vmem:[#allocation2] sm:$0x3] %v153
    // Predicated region
    $region26: #{tpu_custom_call.1} parent=1 // pred_check
      %p155 = pneg %p42
    $region27: #{tpu_custom_call.1} parent=1 // pred_check_branch
      %157 = sbr.rel (%p155) target = $region29
    $region28: #{tpu_custom_call.1} parent=1 // pred_region
      %v158 = vld [vmem:[#allocation2] sm:$0x3]
      %v159 = vld [vmem:[%s2] sm:$0x1]
      %v161 = vlaneseq
      %v162 = vshrl.u32 %v161, 7
      %v163 = vsub.s32 0, %v162
      %v164 = vrot.slane %v159, %v163
      %v166 = vadd.f32 %v158, %v164
      %v167 = vtanh.pop %v166
      %v168 = vmul.f32 %v167, %v167
      %vm169 = vcmask 1041408
      %v170 = vsel %vm169, %v168, 0.0
      %171 = vadd.xlane.f32.xlu0 %v170
      %v172 = vpop.xlane.xlu0 %171
      %v173 = vrsqrt.pop %v172
      %v174 = vmul.f32 %v172, %v173
      %vm175 = vcmp.eq.f32.partialorder %v172, inf
      %v176 = vsel %vm175, %v172, %v174
      %vm177 = vcmp.eq.f32.partialorder %v172, 0.0
      %v178 = vand.u32 %v172, 2147483648
      %v179 = vsel %vm177, %v178, %v176
      %v180 = vmax.f32 %v179, 1e-12
      %v181 = vrcp.pop %v180
      %v182 = vmul.f32 %v167, %v181
      %183 = vst [vmem:[#allocation8] sm:$0x3] %v182
    $region29: #{tpu_custom_call.1} parent=1 // pred_fallthru
      _
    // Predicated region
    $region30: #{tpu_custom_call.1} parent=1 // pred_check
      _
    $region31: #{tpu_custom_call.1} parent=1 // pred_check_branch
      %185 = sbr.rel (0) target = $region33
    $region32: #{tpu_custom_call.1} parent=1 // pred_region
      %s187 = ssub.s32 32, 32
      %188 = vsyncadd [#allocation5], %s187
      %s190 = sshll.u32 [#allocation8], 4
      %s191 = int_to_ptr.vmem [resolvable:$true] %s190
      %193 = dma.vmem_to_hbm [thread:$0]  %s191, 32, %s3, [#allocation5]
    $region33: #{tpu_custom_call.1} parent=1 // pred_fallthru
      _
    // Predicated region
    $region34: #{tpu_custom_call.1} parent=1 // pred_check
      _
    $region35: #{tpu_custom_call.1} parent=1 // pred_check_branch
      %195 = sbr.rel (0) target = $region37
    $region36: #{tpu_custom_call.1} parent=1 // pred_region
      %196 = dma.done [#allocation5], 32
    $region37: #{tpu_custom_call.1} parent=1 // pred_fallthru
      _
    %197 = vsyncpa [#allocation4], 1
    %198 = vsyncpa [#allocation7], 1
    %199 = vsyncpa [#allocation5], 1

</llo_original>
